<compile_context>
chip_gen: v7x
topology: tpu7x:2x2x1
jax: 0.10.0
libtpu: 0.0.40
codegen_flags: <defaults>
</compile_context>

<pallas_src>
import functools

import jax
import jax.numpy as jnp
import numpy as np
from jax.experimental import pallas as pl
from jax.experimental.pallas import tpu as pltpu


def _round_up(x: int, m: int) -> int:
    return ((x + m - 1) // m) * m


# ----------------------------- Pallas kernel ------------------------------ #

def _fused_decision_kernel(x_ref, w1_ref, b1_ref, w2_ref, b2_ref, w3_ref,
                           b3_ref, vs_ref, o_ref, *, use_tanh):
    x = x_ref[...]                                                   # (Tb, Dp)
    # Layer 1: block-diag Linear + ReLU (padded cols stay exactly 0).
    h1 = jnp.dot(x, w1_ref[...], preferred_element_type=jnp.float32) + b1_ref[...]
    h1 = jnp.maximum(h1, 0.0)                                        # (Tb, H1p)
    # Layer 2: block-diag Linear + ReLU.
    h2 = jnp.dot(h1, w2_ref[...], preferred_element_type=jnp.float32) + b2_ref[...]
    h2 = jnp.maximum(h2, 0.0)                                        # (Tb, H2p)
    # Layer 3: block-diag Linear -> per-view logits (padded cols are 0).
    logits = jnp.dot(h2, w3_ref[...], preferred_element_type=jnp.float32) + b3_ref[...]
    if use_tanh:
        # num_classes == 2: W3/b3 pre-scaled by 0.5, so tanh(z/2) == 2*sigmoid(z)-1.
        act = jnp.tanh(logits)                                       # EUP
    else:
        act = jax.nn.sigmoid(logits)
    # Masked mean over views: vs has 1/V on real view columns, 0 on padding.
    y = jnp.sum(act * vs_ref[...], axis=-1, keepdims=True)           # (Tb, 1)
    o_ref[...] = y.astype(o_ref.dtype)


@functools.partial(jax.jit, static_argnames=("use_tanh",))
def _fused_forward(x_cat, w1, b1, w2, b2, w3, b3, vscale, *, use_tanh):
    B, D = x_cat.shape
    Dp, H1p = w1.shape
    H2p = w2.shape[1]
    Vp = w3.shape[1]

    # Batch tiling: big enough to pipeline well, small enough not to pad tiny
    # demo batches by 64x.
    tile_b = min(512, _round_up(B, 8))
    b_pad = _round_up(B, tile_b)
    n_tiles = b_pad // tile_b

    # Zero-pad batch rows and feature columns (exact: padded W1 rows are zero).
    xp = jnp.pad(x_cat.astype(jnp.float32), ((0, b_pad - B), (0, Dp - D)))

    kernel = functools.partial(_fused_decision_kernel, use_tanh=use_tanh)
    const = lambda i: (0, 0)    # weights/biases: VMEM-resident, never re-fetched

    out = pl.pallas_call(
        kernel,
        out_shape=jax.ShapeDtypeStruct((b_pad, 1), jnp.float32),
        grid=(n_tiles,),
        in_specs=[
            pl.BlockSpec((tile_b, Dp), lambda i: (i, 0)),   # streamed x tile
            pl.BlockSpec((Dp, H1p), const),
            pl.BlockSpec((1, H1p), const),
            pl.BlockSpec((H1p, H2p), const),
            pl.BlockSpec((1, H2p), const),
            pl.BlockSpec((H2p, Vp), const),
            pl.BlockSpec((1, Vp), const),
            pl.BlockSpec((1, Vp), const),                   # view-mean mask
        ],
        out_specs=pl.BlockSpec((tile_b, 1), lambda i: (i, 0)),
        compiler_params=pltpu.CompilerParams(
            dimension_semantics=("parallel",),              # megacore on v7x
            vmem_limit_bytes=32 * 1024 * 1024,
        ),
    )(xp, w1, b1, w2, b2, w3, b3, vscale)
    return out[:B, 0]                                       # matches squeeze(1)


# --------------------------- parameter preparation -------------------------- #

def prepare_fused_params(params, num_classes):
    """Fuse per-view MLPs into lane-padded block-diagonal weights (done once)."""
    n_views = len(params)
    use_tanh = (num_classes == 2)

    def blockdiag_padded(mats, scale=1.0):
        rows = sum(m.shape[0] for m in mats)
        cols = sum(m.shape[1] for m in mats)
        rp, cp = _round_up(rows, 128), _round_up(cols, 128)
        out = np.zeros((rp, cp), np.float32)
        r = c = 0
        for m in mats:
            m = np.asarray(m, np.float32)
            out[r:r + m.shape[0], c:c + m.shape[1]] = scale * m
            r += m.shape[0]
            c += m.shape[1]
        return out

    def concat_padded(vecs, scale=1.0):
        v = np.concatenate([np.asarray(b, np.float32) for b in vecs])
        out = np.zeros((1, _round_up(v.shape[0], 128)), np.float32)
        out[0, :v.shape[0]] = scale * v
        return out

    # For num_classes == 2 pre-scale the last layer by 0.5 (tanh fold).
    s3 = 0.5 if use_tanh else 1.0
    w1 = blockdiag_padded([p["w1"] for p in params])
    w2 = blockdiag_padded([p["w2"] for p in params])
    w3 = blockdiag_padded([p["w3"] for p in params], scale=s3)
    b1 = concat_padded([p["b1"] for p in params])
    b2 = concat_padded([p["b2"] for p in params])
    b3 = concat_padded([p["b3"] for p in params], scale=s3)

    vscale = np.zeros((1, w3.shape[1]), np.float32)
    vscale[0, :n_views] = 1.0 / n_views

    to_dev = lambda a: jnp.asarray(a, jnp.float32)
    return {"w1": to_dev(w1), "b1": to_dev(b1), "w2": to_dev(w2),
            "b2": to_dev(b2), "w3": to_dev(w3), "b3": to_dev(b3),
            "vscale": to_dev(vscale), "use_tanh": use_tanh}


def decision_fusion_forward(x_list, fused):
    """x_list: list of (B, D_v) f32 arrays. fused: output of prepare_fused_params."""
    x_cat = jnp.concatenate(x_list, axis=1)                 # (B, sumD)
    return _fused_forward(x_cat, fused["w1"], fused["b1"], fused["w2"],
                          fused["b2"], fused["w3"], fused["b3"],
                          fused["vscale"], use_tanh=fused["use_tanh"])


# --------------------------- reference & params ---------------------------- #

def reference_forward(x_list, params, num_classes):
    ys = []
    for x, p in zip(x_list, params):
        h1 = jax.nn.relu(x @ p["w1"] + p["b1"])
        h2 = jax.nn.relu(h1 @ p["w2"] + p["b2"])
        y = jax.nn.sigmoid(h2 @ p["w3"] + p["b3"])
        ys.append(y[:, 0])
    y = jnp.mean(jnp.stack(ys), axis=0)
    if num_classes == 2:
        y = 2.0 * (y - 0.5)
    return y


def init_params(key, feature_dims):
    """Deterministic init mimicking nn.Linear defaults: U(-1/sqrt(fan_in), +)."""
    params = []
    for d in feature_dims:
        h = d // 2
        layer_dims = [(d, h), (h, 10), (10, 1)]
        layer = {}
        for li, (fi, fo) in enumerate(layer_dims, start=1):
            key, kw, kb = jax.random.split(key, 3)
            bound = 1.0 / np.sqrt(fi)
            layer[f"w{li}"] = jax.random.uniform(
                kw, (fi, fo), jnp.float32, -bound, bound)
            layer[f"b{li}"] = jax.random.uniform(
                kb, (fo,), jnp.float32, -bound, bound)
        params.append(layer)
    return params


# --------------------------------- main ------------------------------------ #

if __name__ == "__main__":
    feature_dict = {"rgb": 32, "depth": 24, "audio": 16}   # per-view feature dims
    batch = 8

    key = jax.random.PRNGKey(0)
    key, *xkeys = jax.random.split(key, len(feature_dict) + 1)
    x_list = [
        jax.random.normal(k, (batch, d), jnp.float32)
        for k, d in zip(xkeys, feature_dict.values())
    ]
    params = init_params(key, list(feature_dict.values()))

    # num_classes == 2 path (tanh fold).
    fused2 = prepare_fused_params(params, num_classes=2)
    y2 = jax.block_until_ready(decision_fusion_forward(x_list, fused2))
    y2_ref = reference_forward(x_list, params, num_classes=2)
    np.testing.assert_allclose(np.asarray(y2), np.asarray(y2_ref),
                               rtol=1e-5, atol=1e-5)

    # num_classes != 2 path (plain sigmoid mean).
    fused3 = prepare_fused_params(params, num_classes=3)
    y3 = jax.block_until_ready(decision_fusion_forward(x_list, fused3))
    y3_ref = reference_forward(x_list, params, num_classes=3)
    np.testing.assert_allclose(np.asarray(y3), np.asarray(y3_ref),
                               rtol=1e-5, atol=1e-5)

    print("KERNEL_OK")
</pallas_src>

<mosaic_0001>
module attributes {stable_mosaic.version = 11 : i64} {
  func.func @_fused_decision_kernel(%arg0: i32, %arg1: memref<8x128xf32, #tpu.memory_space<vmem>>, %arg2: memref<128x128xf32, #tpu.memory_space<vmem>>, %arg3: memref<1x128xf32, #tpu.memory_space<vmem>>, %arg4: memref<128x128xf32, #tpu.memory_space<vmem>>, %arg5: memref<1x128xf32, #tpu.memory_space<vmem>>, %arg6: memref<128x128xf32, #tpu.memory_space<vmem>>, %arg7: memref<1x128xf32, #tpu.memory_space<vmem>>, %arg8: memref<1x128xf32, #tpu.memory_space<vmem>>, %arg9: memref<8x1xf32, #tpu.memory_space<vmem>>) attributes {dimension_semantics = [#tpu.dimension_semantics<parallel>], iteration_bounds = array<i64: 1>, scalar_prefetch = 0 : i64, scratch_operands = 0 : i64, tpu.core_type = #tpu.core_type<tc>, window_params = [{transform_indices = @transform_0, window_bounds = array<i64: 8, 128>}, {pipeline_mode = #tpu.pipeline_mode<synchronous>, transform_indices = @transform_1, window_bounds = array<i64: 128, 128>}, {pipeline_mode = #tpu.pipeline_mode<synchronous>, transform_indices = @transform_2, window_bounds = array<i64: 1, 128>}, {pipeline_mode = #tpu.pipeline_mode<synchronous>, transform_indices = @transform_3, window_bounds = array<i64: 128, 128>}, {pipeline_mode = #tpu.pipeline_mode<synchronous>, transform_indices = @transform_4, window_bounds = array<i64: 1, 128>}, {pipeline_mode = #tpu.pipeline_mode<synchronous>, transform_indices = @transform_5, window_bounds = array<i64: 128, 128>}, {pipeline_mode = #tpu.pipeline_mode<synchronous>, transform_indices = @transform_6, window_bounds = array<i64: 1, 128>}, {pipeline_mode = #tpu.pipeline_mode<synchronous>, transform_indices = @transform_7, window_bounds = array<i64: 1, 128>}, {transform_indices = @transform_8, window_bounds = array<i64: 8, 1>}]} {
    %c0 = arith.constant 0 : index
    %c0_0 = arith.constant 0 : index
    %0 = vector.load %arg1[%c0, %c0_0] : memref<8x128xf32, #tpu.memory_space<vmem>>, vector<8x128xf32>
    %c0_1 = arith.constant 0 : index
    %c0_2 = arith.constant 0 : index
    %1 = vector.load %arg2[%c0_1, %c0_2] : memref<128x128xf32, #tpu.memory_space<vmem>>, vector<128x128xf32>
    %cst = arith.constant dense<0.000000e+00> : vector<8x128xf32>
    %2 = tpu.matmul %0, %1, %cst {dimension_numbers = #tpu.dot_dimension_numbers<[1], [0], [0], [1], [0, 0, 1, 1], [], []>} : vector<8x128xf32>, vector<128x128xf32>, vector<8x128xf32> -> vector<8x128xf32>
    %c0_3 = arith.constant 0 : index
    %c0_4 = arith.constant 0 : index
    %3 = vector.load %arg3[%c0_3, %c0_4] : memref<1x128xf32, #tpu.memory_space<vmem>>, vector<1x128xf32>
    %4 = vector.broadcast %3 : vector<1x128xf32> to vector<8x128xf32>
    %5 = arith.addf %2, %4 : vector<8x128xf32>
    %cst_5 = arith.constant 0.000000e+00 : f32
    %6 = vector.broadcast %cst_5 : f32 to vector<8x128xf32>
    %7 = arith.maximumf %5, %6 : vector<8x128xf32>
    %c0_6 = arith.constant 0 : index
    %c0_7 = arith.constant 0 : index
    %8 = vector.load %arg4[%c0_6, %c0_7] : memref<128x128xf32, #tpu.memory_space<vmem>>, vector<128x128xf32>
    %cst_8 = arith.constant dense<0.000000e+00> : vector<8x128xf32>
    %9 = tpu.matmul %7, %8, %cst_8 {dimension_numbers = #tpu.dot_dimension_numbers<[1], [0], [0], [1], [0, 0, 1, 1], [], []>} : vector<8x128xf32>, vector<128x128xf32>, vector<8x128xf32> -> vector<8x128xf32>
    %c0_9 = arith.constant 0 : index
    %c0_10 = arith.constant 0 : index
    %10 = vector.load %arg5[%c0_9, %c0_10] : memref<1x128xf32, #tpu.memory_space<vmem>>, vector<1x128xf32>
    %11 = vector.broadcast %10 : vector<1x128xf32> to vector<8x128xf32>
    %12 = arith.addf %9, %11 : vector<8x128xf32>
    %cst_11 = arith.constant 0.000000e+00 : f32
    %13 = vector.broadcast %cst_11 : f32 to vector<8x128xf32>
    %14 = arith.maximumf %12, %13 : vector<8x128xf32>
    %c0_12 = arith.constant 0 : index
    %c0_13 = arith.constant 0 : index
    %15 = vector.load %arg6[%c0_12, %c0_13] : memref<128x128xf32, #tpu.memory_space<vmem>>, vector<128x128xf32>
    %cst_14 = arith.constant dense<0.000000e+00> : vector<8x128xf32>
    %16 = tpu.matmul %14, %15, %cst_14 {dimension_numbers = #tpu.dot_dimension_numbers<[1], [0], [0], [1], [0, 0, 1, 1], [], []>} : vector<8x128xf32>, vector<128x128xf32>, vector<8x128xf32> -> vector<8x128xf32>
    %c0_15 = arith.constant 0 : index
    %c0_16 = arith.constant 0 : index
    %17 = vector.load %arg7[%c0_15, %c0_16] : memref<1x128xf32, #tpu.memory_space<vmem>>, vector<1x128xf32>
    %18 = vector.broadcast %17 : vector<1x128xf32> to vector<8x128xf32>
    %19 = arith.addf %16, %18 : vector<8x128xf32>
    %20 = math.tanh %19 : vector<8x128xf32>
    %c0_17 = arith.constant 0 : index
    %c0_18 = arith.constant 0 : index
    %21 = vector.load %arg8[%c0_17, %c0_18] : memref<1x128xf32, #tpu.memory_space<vmem>>, vector<1x128xf32>
    %22 = vector.broadcast %21 : vector<1x128xf32> to vector<8x128xf32>
    %23 = arith.mulf %20, %22 : vector<8x128xf32>
    %cst_19 = arith.constant dense<0.000000e+00> : vector<8xf32>
    %24 = vector.multi_reduction <add>, %23, %cst_19 [1] : vector<8x128xf32> to vector<8xf32>
    %25 = vector.shape_cast %24 : vector<8xf32> to vector<8x1xf32>
    %c0_20 = arith.constant 0 : index
    %c0_21 = arith.constant 0 : index
    %26 = vector.load %arg9[%c0_20, %c0_21] : memref<8x1xf32, #tpu.memory_space<vmem>>, vector<8x1xf32>
    tpu.vector_store %arg9[%c0_20, %c0_21], %25 {strides = array<i32>} : memref<8x1xf32, #tpu.memory_space<vmem>>, vector<8x1xf32>,
    return
  }
  func.func @transform_0(%arg0: i32) -> (i32, i32) {
    %c0_i32 = arith.constant 0 : i32
    %c0_i32_0 = arith.constant 0 : i32
    return %arg0, %c0_i32 : i32, i32
  }
  func.func @transform_1(%arg0: i32) -> (i32, i32) {
    %c0_i32 = arith.constant 0 : i32
    %c0_i32_0 = arith.constant 0 : i32
    %c0_i32_1 = arith.constant 0 : i32
    return %c0_i32, %c0_i32_0 : i32, i32
  }
  func.func @transform_2(%arg0: i32) -> (i32, i32) {
    %c0_i32 = arith.constant 0 : i32
    %c0_i32_0 = arith.constant 0 : i32
    %c0_i32_1 = arith.constant 0 : i32
    return %c0_i32, %c0_i32_0 : i32, i32
  }
  func.func @transform_3(%arg0: i32) -> (i32, i32) {
    %c0_i32 = arith.constant 0 : i32
    %c0_i32_0 = arith.constant 0 : i32
    %c0_i32_1 = arith.constant 0 : i32
    return %c0_i32, %c0_i32_0 : i32, i32
  }
  func.func @transform_4(%arg0: i32) -> (i32, i32) {
    %c0_i32 = arith.constant 0 : i32
    %c0_i32_0 = arith.constant 0 : i32
    %c0_i32_1 = arith.constant 0 : i32
    return %c0_i32, %c0_i32_0 : i32, i32
  }
  func.func @transform_5(%arg0: i32) -> (i32, i32) {
    %c0_i32 = arith.constant 0 : i32
    %c0_i32_0 = arith.constant 0 : i32
    %c0_i32_1 = arith.constant 0 : i32
    return %c0_i32, %c0_i32_0 : i32, i32
  }
  func.func @transform_6(%arg0: i32) -> (i32, i32) {
    %c0_i32 = arith.constant 0 : i32
    %c0_i32_0 = arith.constant 0 : i32
    %c0_i32_1 = arith.constant 0 : i32
    return %c0_i32, %c0_i32_0 : i32, i32
  }
  func.func @transform_7(%arg0: i32) -> (i32, i32) {
    %c0_i32 = arith.constant 0 : i32
    %c0_i32_0 = arith.constant 0 : i32
    %c0_i32_1 = arith.constant 0 : i32
    return %c0_i32, %c0_i32_0 : i32, i32
  }
  func.func @transform_8(%arg0: i32) -> (i32, i32) {
    %c0_i32 = arith.constant 0 : i32
    %c0_i32_0 = arith.constant 0 : i32
    return %arg0, %c0_i32 : i32, i32
  }
}

</mosaic_0001>

<llo_original>
// kernel: _fused_forward.1
$region0: #{_fused_forward.1}
  #allocation0 [shape = 'u32[]', space=smem, size = 0x4, offset = 0x4, fixed_abs, tag = 'smem constant byte address 0x4 - core index']
  #allocation1 [shape = 'u32[144,128]{1,0:T(1,128)}', space=vmem, size = 0x12000, scoped, tag = 'internal scratch']
  %s0 = inlined_call_operand.vmem [shape: f32[8,128], index: 0, kind: input, shape index: {}]
  %s1 = inlined_call_operand.hbm [shape: f32[128,128], index: 1, kind: input, shape index: {}]
  %s2 = inlined_call_operand.vmem [shape: f32[1,128], index: 2, kind: input, shape index: {}]
  %s3 = inlined_call_operand.hbm [shape: f32[128,128], index: 3, kind: input, shape index: {}]
  %s4 = inlined_call_operand.vmem [shape: f32[1,128], index: 4, kind: input, shape index: {}]
  %s5 = inlined_call_operand.hbm [shape: f32[128,128], index: 5, kind: input, shape index: {}]
  %s6 = inlined_call_operand.vmem [shape: f32[1,128], index: 6, kind: input, shape index: {}]
  %s7 = inlined_call_operand.vmem [shape: f32[1,128], index: 7, kind: input, shape index: {}]
  %s8 = inlined_call_operand.vmem [shape: f32[8,1], index: 8, kind: output, shape index: {}]
  %s9 = sld [smem:[#allocation0]]
  $region54: #{_fused_forward.1} parent=0
    _
  %s11 = ssub.s32 1, %s9
  %s12 = scalar_select 0, %s11, %s9
  $region1: #{_fused_forward.1} parent=0
    #allocation2 [shape = 'u8[65536]{0}', space=vmem, size = 0x10000, scoped, tag = 'input window, operand 1, single buffered']
    #allocation3 [shape = 's32[1]{0}', space=sflag, size = 0x4, scoped, tag = 'scoped memory for _fused_forward.1']
    #allocation4 [shape = 'u8[65536]{0}', space=vmem, size = 0x10000, scoped, tag = 'input window, operand 3, single buffered']
    #allocation5 [shape = 's32[1]{0}', space=sflag, size = 0x4, scoped, tag = 'scoped memory for _fused_forward.1']
    #allocation6 [shape = 'u8[65536]{0}', space=vmem, size = 0x10000, scoped, tag = 'input window, operand 5, single buffered']
    %13 = vsyncpa [#allocation3], 0
    %14 = vsyncpa [#allocation5], 0
    // Predicated region
    $region2: #{_fused_forward.1} parent=1 // pred_check
      _
    $region3: #{_fused_forward.1} parent=1 // pred_check_branch
      %16 = sbr.rel (0) target = $region5
    $region4: #{_fused_forward.1} parent=1 // pred_region
      _
    $region5: #{_fused_forward.1} parent=1 // pred_fallthru
      _
    // Predicated region
    $region6: #{_fused_forward.1} parent=1 // pred_check
      _
    $region7: #{_fused_forward.1} parent=1 // pred_check_branch
      %18 = sbr.rel (0) target = $region9
    $region8: #{_fused_forward.1} parent=1 // pred_region
      %s20 = ssub.s32 2048, 2048
      %21 = vsyncadd [#allocation3], %s20
      %s22 = sshll.u32 [#allocation2], 4
      %s23 = int_to_ptr.vmem [resolvable:$true] %s22
      %28 = dma.hbm_to_vmem [thread:$0]  %s1, 2048, %s23, [#allocation3], 128, 128, 8
    $region9: #{_fused_forward.1} parent=1 // pred_fallthru
      _
    // Predicated region
    $region10: #{_fused_forward.1} parent=1 // pred_check
      _
    $region11: #{_fused_forward.1} parent=1 // pred_check_branch
      %30 = sbr.rel (0) target = $region13
    $region12: #{_fused_forward.1} parent=1 // pred_region
      _
    $region13: #{_fused_forward.1} parent=1 // pred_fallthru
      _
    // Predicated region
    $region14: #{_fused_forward.1} parent=1 // pred_check
      _
    $region15: #{_fused_forward.1} parent=1 // pred_check_branch
      %32 = sbr.rel (0) target = $region17
    $region16: #{_fused_forward.1} parent=1 // pred_region
      %s34 = ssub.s32 2048, 2048
      %35 = vsyncadd [#allocation5], %s34
      %s36 = sshll.u32 [#allocation4], 4
      %s37 = int_to_ptr.vmem [resolvable:$true] %s36
      %42 = dma.hbm_to_vmem [thread:$0]  %s3, 2048, %s37, [#allocation5], 128, 128, 8
    $region17: #{_fused_forward.1} parent=1 // pred_fallthru
      _
    // Predicated region
    $region18: #{_fused_forward.1} parent=1 // pred_check
      _
    $region19: #{_fused_forward.1} parent=1 // pred_check_branch
      %44 = sbr.rel (0) target = $region21
    $region20: #{_fused_forward.1} parent=1 // pred_region
      _
    $region21: #{_fused_forward.1} parent=1 // pred_fallthru
      _
    // Predicated region
    $region22: #{_fused_forward.1} parent=1 // pred_check
      _
    $region23: #{_fused_forward.1} parent=1 // pred_check_branch
      %46 = sbr.rel (0) target = $region25
    $region24: #{_fused_forward.1} parent=1 // pred_region
      %s48 = ssub.s32 2048, 2048
      %49 = vsyncadd [#allocation5], %s48
      %s50 = sshll.u32 [#allocation6], 4
      %s51 = int_to_ptr.vmem [resolvable:$true] %s50
      %56 = dma.hbm_to_vmem [thread:$0]  %s5, 2048, %s51, [#allocation5], 128, 128, 8
    $region25: #{_fused_forward.1} parent=1 // pred_fallthru
      _
    // Predicated region
    $region26: #{_fused_forward.1} parent=1 // pred_check
      _
    $region27: #{_fused_forward.1} parent=1 // pred_check_branch
      %58 = sbr.rel (0) target = $region29
    $region28: #{_fused_forward.1} parent=1 // pred_region
      _
    $region29: #{_fused_forward.1} parent=1 // pred_fallthru
      _
    // Predicated region
    $region30: #{_fused_forward.1} parent=1 // pred_check
      _
    $region31: #{_fused_forward.1} parent=1 // pred_check_branch
      %60 = sbr.rel (0) target = $region33
    $region32: #{_fused_forward.1} parent=1 // pred_region
      _
    $region33: #{_fused_forward.1} parent=1 // pred_fallthru
      _
    // Predicated region
    $region34: #{_fused_forward.1} parent=1 // pred_check
      _
    $region35: #{_fused_forward.1} parent=1 // pred_check_branch
      %62 = sbr.rel (0) target = $region37
    $region36: #{_fused_forward.1} parent=1 // pred_region
      %63 = dma.done [#allocation3], 2048
    $region37: #{_fused_forward.1} parent=1 // pred_fallthru
      _
    // Predicated region
    $region38: #{_fused_forward.1} parent=1 // pred_check
      _
    $region39: #{_fused_forward.1} parent=1 // pred_check_branch
      %65 = sbr.rel (0) target = $region41
    $region40: #{_fused_forward.1} parent=1 // pred_region
      %66 = dma.done [#allocation5], 2048
    $region41: #{_fused_forward.1} parent=1 // pred_fallthru
      _
    // Predicated region
    $region42: #{_fused_forward.1} parent=1 // pred_check
      _
    $region43: #{_fused_forward.1} parent=1 // pred_check_branch
      %68 = sbr.rel (0) target = $region45
    $region44: #{_fused_forward.1} parent=1 // pred_region
      %69 = dma.done [#allocation5], 2048
    $region45: #{_fused_forward.1} parent=1 // pred_fallthru
      _
    %v70 = vld [vmem:[%s0] sm:$0xff]
    %v71 = vld [vmem:[#allocation2] sm:$0xff]
    %v72 = vld [vmem:[#allocation2 + $0x8] sm:$0xff]
    %v73 = vld [vmem:[#allocation2 + $0x10] sm:$0xff]
    %v74 = vld [vmem:[#allocation2 + $0x18] sm:$0xff]
    %v75 = vld [vmem:[#allocation2 + $0x20] sm:$0xff]
    %v76 = vld [vmem:[#allocation2 + $0x28] sm:$0xff]
    %v77 = vld [vmem:[#allocation2 + $0x30] sm:$0xff]
    %v78 = vld [vmem:[#allocation2 + $0x38] sm:$0xff]
    %v79 = vld [vmem:[#allocation2 + $0x40] sm:$0xff]
    %v80 = vld [vmem:[#allocation2 + $0x48] sm:$0xff]
    %v81 = vld [vmem:[#allocation2 + $0x50] sm:$0xff]
    %v82 = vld [vmem:[#allocation2 + $0x58] sm:$0xff]
    %v83 = vld [vmem:[#allocation2 + $0x60] sm:$0xff]
    %v84 = vld [vmem:[#allocation2 + $0x68] sm:$0xff]
    %v85 = vld [vmem:[#allocation2 + $0x70] sm:$0xff]
    %v86 = vld [vmem:[#allocation2 + $0x78] sm:$0xff]
    %v87 = vld [vmem:[%s2] sm:$0x1]
    %v89 = vlaneseq
    %v90 = vshrl.u32 %v89, 7
    %v91 = vsub.s32 0, %v90
    %v92 = vrot.slane %v87, %v91
    %94 = vmatprep.subr.mxu0 0.0
    %95 = vmatpush1.msra.mxu0 %v71
    %96 = vmatprep.subr.mxu0 0.0
    %97 = vmatpush1.msra.mxu0 %v72
    %98 = vmatprep.subr.mxu0 0.0
    %99 = vmatpush1.msra.mxu0 %v73
    %100 = vmatprep.subr.mxu0 0.0
    %101 = vmatpush1.msra.mxu0 %v74
    %102 = vmatprep.subr.mxu0 0.0
    %103 = vmatpush1.msra.mxu0 %v75
    %104 = vmatprep.subr.mxu0 0.0
    %105 = vmatpush1.msra.mxu0 %v76
    %106 = vmatprep.subr.mxu0 0.0
    %107 = vmatpush1.msra.mxu0 %v77
    %108 = vmatprep.subr.mxu0 0.0
    %109 = vmatpush1.msra.mxu0 %v78
    %110 = vmatprep.subr.mxu0 0.0
    %111 = vmatpush1.msra.mxu0 %v79
    %112 = vmatprep.subr.mxu0 0.0
    %113 = vmatpush1.msra.mxu0 %v80
    %114 = vmatprep.subr.mxu0 0.0
    %115 = vmatpush1.msra.mxu0 %v81
    %116 = vmatprep.subr.mxu0 0.0
    %117 = vmatpush1.msra.mxu0 %v82
    %118 = vmatprep.subr.mxu0 0.0
    %119 = vmatpush1.msra.mxu0 %v83
    %120 = vmatprep.subr.mxu0 0.0
    %121 = vmatpush1.msra.mxu0 %v84
    %122 = vmatprep.subr.mxu0 0.0
    %123 = vmatpush1.msra.mxu0 %v85
    %124 = vmatprep.subr.mxu0 0.0
    %125 = vmatpush1.msra.mxu0 %v86
    %126 = vmatprep.subr.mxu0 0.0
    %127 = vmatpush1.msra.mxu0 0.0
    %128 = vmatprep.subr.mxu0 0.0
    %129 = vmatpush1.msra.mxu0 0.0
    %130 = vmatprep.subr.mxu0 0.0
    %131 = vmatpush1.msra.mxu0 0.0
    %132 = vmatprep.subr.mxu0 0.0
    %133 = vmatpush1.msra.mxu0 0.0
    %134 = vmatprep.subr.mxu0 0.0
    %135 = vmatpush1.msra.mxu0 0.0
    %136 = vmatprep.subr.mxu0 0.0
    %137 = vmatpush1.msra.mxu0 0.0
    %138 = vmatprep.subr.mxu0 0.0
    %139 = vmatpush1.msra.mxu0 0.0
    %140 = vmatprep.subr.mxu0 0.0
    %141 = vmatpush1.msra.mxu0 0.0
    %142 = vmatprep.subr.mxu0 0.0
    %143 = vmatpush1.msra.mxu0 0.0
    %144 = vmatprep.subr.mxu0 0.0
    %145 = vmatpush1.msra.mxu0 0.0
    %146 = vmatprep.subr.mxu0 0.0
    %147 = vmatpush1.msra.mxu0 0.0
    %148 = vmatprep.subr.mxu0 0.0
    %149 = vmatpush1.msra.mxu0 0.0
    %150 = vmatprep.subr.mxu0 0.0
    %151 = vmatpush1.msra.mxu0 0.0
    %152 = vmatprep.subr.mxu0 0.0
    %153 = vmatpush1.msra.mxu0 0.0
    %154 = vmatprep.subr.mxu0 0.0
    %155 = vmatpush1.msra.mxu0 0.0
    %156 = vmatprep.subr.mxu0 0.0
    %157 = vmatpush1.msra.mxu0 0.0
    %158 = vmatprep.mubr.f32.mxu0 0.0
    %159 = vmatmul.mubr.f32.gmra.mrb[0].mxu0 %v70
    %v160 = vpop.f32.mrb[0].mxu0
    %v161 = vadd.f32 %v92, %v160
    %v162 = vpop.f32.mrb[0].mxu0
    %163 = vdwg.mxu0
    %v164 = vmax.f32 %v161, 0.0
    %v165 = vld [vmem:[#allocation4] sm:$0xff]
    %v166 = vld [vmem:[#allocation4 + $0x8] sm:$0xff]
    %v167 = vld [vmem:[#allocation4 + $0x10] sm:$0xff]
    %v168 = vld [vmem:[#allocation4 + $0x18] sm:$0xff]
    %v169 = vld [vmem:[#allocation4 + $0x20] sm:$0xff]
    %v170 = vld [vmem:[#allocation4 + $0x28] sm:$0xff]
    %v171 = vld [vmem:[#allocation4 + $0x30] sm:$0xff]
    %v172 = vld [vmem:[#allocation4 + $0x38] sm:$0xff]
    %v173 = vld [vmem:[#allocation4 + $0x40] sm:$0xff]
    %v174 = vld [vmem:[#allocation4 + $0x48] sm:$0xff]
    %v175 = vld [vmem:[#allocation4 + $0x50] sm:$0xff]
    %v176 = vld [vmem:[#allocation4 + $0x58] sm:$0xff]
    %v177 = vld [vmem:[#allocation4 + $0x60] sm:$0xff]
    %v178 = vld [vmem:[#allocation4 + $0x68] sm:$0xff]
    %v179 = vld [vmem:[#allocation4 + $0x70] sm:$0xff]
    %v180 = vld [vmem:[#allocation4 + $0x78] sm:$0xff]
    %v181 = vld [vmem:[%s4] sm:$0x1]
    %v183 = vlaneseq
    %v184 = vshrl.u32 %v183, 7
    %v185 = vsub.s32 0, %v184
    %v186 = vrot.slane %v181, %v185
    %188 = vmatprep.subr.mxu0 0.0
    %189 = vmatpush1.msra.mxu0 %v165
    %190 = vmatprep.subr.mxu0 0.0
    %191 = vmatpush1.msra.mxu0 %v166
    %192 = vmatprep.subr.mxu0 0.0
    %193 = vmatpush1.msra.mxu0 %v167
    %194 = vmatprep.subr.mxu0 0.0
    %195 = vmatpush1.msra.mxu0 %v168
    %196 = vmatprep.subr.mxu0 0.0
    %197 = vmatpush1.msra.mxu0 %v169
    %198 = vmatprep.subr.mxu0 0.0
    %199 = vmatpush1.msra.mxu0 %v170
    %200 = vmatprep.subr.mxu0 0.0
    %201 = vmatpush1.msra.mxu0 %v171
    %202 = vmatprep.subr.mxu0 0.0
    %203 = vmatpush1.msra.mxu0 %v172
    %204 = vmatprep.subr.mxu0 0.0
    %205 = vmatpush1.msra.mxu0 %v173
    %206 = vmatprep.subr.mxu0 0.0
    %207 = vmatpush1.msra.mxu0 %v174
    %208 = vmatprep.subr.mxu0 0.0
    %209 = vmatpush1.msra.mxu0 %v175
    %210 = vmatprep.subr.mxu0 0.0
    %211 = vmatpush1.msra.mxu0 %v176
    %212 = vmatprep.subr.mxu0 0.0
    %213 = vmatpush1.msra.mxu0 %v177
    %214 = vmatprep.subr.mxu0 0.0
    %215 = vmatpush1.msra.mxu0 %v178
    %216 = vmatprep.subr.mxu0 0.0
    %217 = vmatpush1.msra.mxu0 %v179
    %218 = vmatprep.subr.mxu0 0.0
    %219 = vmatpush1.msra.mxu0 %v180
    %220 = vmatprep.subr.mxu0 0.0
    %221 = vmatpush1.msra.mxu0 0.0
    %222 = vmatprep.subr.mxu0 0.0
    %223 = vmatpush1.msra.mxu0 0.0
    %224 = vmatprep.subr.mxu0 0.0
    %225 = vmatpush1.msra.mxu0 0.0
    %226 = vmatprep.subr.mxu0 0.0
    %227 = vmatpush1.msra.mxu0 0.0
    %228 = vmatprep.subr.mxu0 0.0
    %229 = vmatpush1.msra.mxu0 0.0
    %230 = vmatprep.subr.mxu0 0.0
    %231 = vmatpush1.msra.mxu0 0.0
    %232 = vmatprep.subr.mxu0 0.0
    %233 = vmatpush1.msra.mxu0 0.0
    %234 = vmatprep.subr.mxu0 0.0
    %235 = vmatpush1.msra.mxu0 0.0
    %236 = vmatprep.subr.mxu0 0.0
    %237 = vmatpush1.msra.mxu0 0.0
    %238 = vmatprep.subr.mxu0 0.0
    %239 = vmatpush1.msra.mxu0 0.0
    %240 = vmatprep.subr.mxu0 0.0
    %241 = vmatpush1.msra.mxu0 0.0
    %242 = vmatprep.subr.mxu0 0.0
    %243 = vmatpush1.msra.mxu0 0.0
    %244 = vmatprep.subr.mxu0 0.0
    %245 = vmatpush1.msra.mxu0 0.0
    %246 = vmatprep.subr.mxu0 0.0
    %247 = vmatpush1.msra.mxu0 0.0
    %248 = vmatprep.subr.mxu0 0.0
    %249 = vmatpush1.msra.mxu0 0.0
    %250 = vmatprep.subr.mxu0 0.0
    %251 = vmatpush1.msra.mxu0 0.0
    %252 = vmatprep.mubr.f32.mxu0 0.0
    %253 = vmatmul.mubr.f32.gmra.mrb[0].mxu0 %v164
    %v254 = vpop.f32.mrb[0].mxu0
    %v255 = vadd.f32 %v186, %v254
    %v256 = vpop.f32.mrb[0].mxu0
    %257 = vdwg.mxu0
    %v258 = vmax.f32 %v255, 0.0
    %v259 = vld [vmem:[#allocation6] sm:$0xff]
    %v260 = vld [vmem:[#allocation6 + $0x8] sm:$0xff]
    %v261 = vld [vmem:[#allocation6 + $0x10] sm:$0xff]
    %v262 = vld [vmem:[#allocation6 + $0x18] sm:$0xff]
    %v263 = vld [vmem:[#allocation6 + $0x20] sm:$0xff]
    %v264 = vld [vmem:[#allocation6 + $0x28] sm:$0xff]
    %v265 = vld [vmem:[#allocation6 + $0x30] sm:$0xff]
    %v266 = vld [vmem:[#allocation6 + $0x38] sm:$0xff]
    %v267 = vld [vmem:[#allocation6 + $0x40] sm:$0xff]
    %v268 = vld [vmem:[#allocation6 + $0x48] sm:$0xff]
    %v269 = vld [vmem:[#allocation6 + $0x50] sm:$0xff]
    %v270 = vld [vmem:[#allocation6 + $0x58] sm:$0xff]
    %v271 = vld [vmem:[#allocation6 + $0x60] sm:$0xff]
    %v272 = vld [vmem:[#allocation6 + $0x68] sm:$0xff]
    %v273 = vld [vmem:[#allocation6 + $0x70] sm:$0xff]
    %v274 = vld [vmem:[#allocation6 + $0x78] sm:$0xff]
    %v275 = vld [vmem:[%s6] sm:$0x1]
    %v277 = vlaneseq
    %v278 = vshrl.u32 %v277, 7
    %v279 = vsub.s32 0, %v278
    %v280 = vrot.slane %v275, %v279
    %282 = vmatprep.subr.mxu0 0.0
    %283 = vmatpush1.msra.mxu0 %v259
    %284 = vmatprep.subr.mxu0 0.0
    %285 = vmatpush1.msra.mxu0 %v260
    %286 = vmatprep.subr.mxu0 0.0
    %287 = vmatpush1.msra.mxu0 %v261
    %288 = vmatprep.subr.mxu0 0.0
    %289 = vmatpush1.msra.mxu0 %v262
    %290 = vmatprep.subr.mxu0 0.0
    %291 = vmatpush1.msra.mxu0 %v263
    %292 = vmatprep.subr.mxu0 0.0
    %293 = vmatpush1.msra.mxu0 %v264
    %294 = vmatprep.subr.mxu0 0.0
    %295 = vmatpush1.msra.mxu0 %v265
    %296 = vmatprep.subr.mxu0 0.0
    %297 = vmatpush1.msra.mxu0 %v266
    %298 = vmatprep.subr.mxu0 0.0
    %299 = vmatpush1.msra.mxu0 %v267
    %300 = vmatprep.subr.mxu0 0.0
    %301 = vmatpush1.msra.mxu0 %v268
    %302 = vmatprep.subr.mxu0 0.0
    %303 = vmatpush1.msra.mxu0 %v269
    %304 = vmatprep.subr.mxu0 0.0
    %305 = vmatpush1.msra.mxu0 %v270
    %306 = vmatprep.subr.mxu0 0.0
    %307 = vmatpush1.msra.mxu0 %v271
    %308 = vmatprep.subr.mxu0 0.0
    %309 = vmatpush1.msra.mxu0 %v272
    %310 = vmatprep.subr.mxu0 0.0
    %311 = vmatpush1.msra.mxu0 %v273
    %312 = vmatprep.subr.mxu0 0.0
    %313 = vmatpush1.msra.mxu0 %v274
    %314 = vmatprep.subr.mxu0 0.0
    %315 = vmatpush1.msra.mxu0 0.0
    %316 = vmatprep.subr.mxu0 0.0
    %317 = vmatpush1.msra.mxu0 0.0
    %318 = vmatprep.subr.mxu0 0.0
    %319 = vmatpush1.msra.mxu0 0.0
    %320 = vmatprep.subr.mxu0 0.0
    %321 = vmatpush1.msra.mxu0 0.0
    %322 = vmatprep.subr.mxu0 0.0
    %323 = vmatpush1.msra.mxu0 0.0
    %324 = vmatprep.subr.mxu0 0.0
    %325 = vmatpush1.msra.mxu0 0.0
    %326 = vmatprep.subr.mxu0 0.0
    %327 = vmatpush1.msra.mxu0 0.0
    %328 = vmatprep.subr.mxu0 0.0
    %329 = vmatpush1.msra.mxu0 0.0
    %330 = vmatprep.subr.mxu0 0.0
    %331 = vmatpush1.msra.mxu0 0.0
    %332 = vmatprep.subr.mxu0 0.0
    %333 = vmatpush1.msra.mxu0 0.0
    %334 = vmatprep.subr.mxu0 0.0
    %335 = vmatpush1.msra.mxu0 0.0
    %336 = vmatprep.subr.mxu0 0.0
    %337 = vmatpush1.msra.mxu0 0.0
    %338 = vmatprep.subr.mxu0 0.0
    %339 = vmatpush1.msra.mxu0 0.0
    %340 = vmatprep.subr.mxu0 0.0
    %341 = vmatpush1.msra.mxu0 0.0
    %342 = vmatprep.subr.mxu0 0.0
    %343 = vmatpush1.msra.mxu0 0.0
    %344 = vmatprep.subr.mxu0 0.0
    %345 = vmatpush1.msra.mxu0 0.0
    %346 = vmatprep.mubr.f32.mxu0 0.0
    %347 = vmatmul.mubr.f32.gmra.mrb[0].mxu0 %v258
    %v348 = vpop.f32.mrb[0].mxu0
    %v349 = vadd.f32 %v280, %v348
    %v350 = vpop.f32.mrb[0].mxu0
    %351 = vdwg.mxu0
    %v352 = vtanh.pop %v349
    %v353 = vld [vmem:[%s7] sm:$0x1]
    %v355 = vlaneseq
    %v356 = vshrl.u32 %v355, 7
    %v357 = vsub.s32 0, %v356
    %v358 = vrot.slane %v353, %v357
    %v360 = vmul.f32 %v352, %v358
    %361 = vadd.xlane.f32.xlu0 %v360
    %v362 = vpop.xlane.xlu0 %361
    %vm363 = vcmask 7168
    %364 = vst.msk [vmem:[%s8] sm:$0xff] %vm363, %v362
    // Predicated region
    $region46: #{_fused_forward.1} parent=1 // pred_check
      _
    $region47: #{_fused_forward.1} parent=1 // pred_check_branch
      %366 = sbr.rel (0) target = $region49
    $region48: #{_fused_forward.1} parent=1 // pred_region
      _
    $region49: #{_fused_forward.1} parent=1 // pred_fallthru
      _
    // Predicated region
    $region50: #{_fused_forward.1} parent=1 // pred_check
      _
    $region51: #{_fused_forward.1} parent=1 // pred_check_branch
      %368 = sbr.rel (0) target = $region53
    $region52: #{_fused_forward.1} parent=1 // pred_region
      _
    $region53: #{_fused_forward.1} parent=1 // pred_fallthru
      _
    %369 = vsyncpa [#allocation3], 1
    %370 = vsyncpa [#allocation5], 1

</llo_original>
